<compile_context>
chip_gen: v5e
topology: v5e:2x2
jax: 0.10.0
libtpu: 0.0.40
codegen_flags: <defaults>
</compile_context>

<pallas_src>
import functools

import jax
import jax.numpy as jnp
from jax.experimental import pallas as pl
from jax.experimental.pallas import tpu as pltpu

SCALE_FACTOR = 0.7   # model_config["scale_factor"]; latent_input=True
SIGMA_DATA = 1.0


# ----------------------------------------------------------------------------
# Pallas kernel: fused denoiser + synthetic network + per-sample weighted MSE.
# Channel-major tiles: one (C, H*W) frame slab per grid step.
# ----------------------------------------------------------------------------
def _diffusion_loss_kernel(coef_ref,   # SMEM (5, B): c_skip, c_out, c_in, w, sigma
                           x_ref,      # VMEM (1, 1, C, HW) bf16 latent (pre-scale)
                           noise_ref,  # VMEM (1, 1, C, HW) bf16
                           cond_ref,   # VMEM (1, H, 1)  f32 per-sample cond+time emb (+b1)
                           w1t_ref,    # VMEM (H, C) f32
                           w2t_ref,    # VMEM (C, H) f32
                           b2_ref,     # VMEM (C, 1) f32
                           out_ref,    # VMEM (1, 1, 128) per-sample loss (lane-replicated)
                           acc_ref,    # VMEM scratch (1, 1) f32: running sum of sq-err
                           *, inv_n_elem, scale_factor):
    b = pl.program_id(0)
    t = pl.program_id(1)

    c_skip = coef_ref[0, b]
    c_out = coef_ref[1, b]
    c_in = coef_ref[2, b]
    w = coef_ref[3, b]
    sigma = coef_ref[4, b]

    @pl.when(t == 0)
    def _():
        acc_ref[...] = jnp.zeros_like(acc_ref)

    # ---- encode_first_stage (latent_input=True): z = x * scale_factor ----
    x = x_ref[0, 0].astype(jnp.float32) * scale_factor      # (C, HW), lane-dense
    noise = noise_ref[0, 0].astype(jnp.float32)              # (C, HW)

    # ---- forward diffusion noising + EDM input preconditioning ----
    noised = x + noise * sigma
    inp = noised * c_in

    # ---- synthetic DiT-like channel MLP with conditioning (channel-major) ----
    h = jnp.dot(w1t_ref[...], inp, preferred_element_type=jnp.float32)   # (H, HW)
    h = h + cond_ref[0]                                                  # + (H, 1) bias+cond
    h = jax.nn.gelu(h)                                                   # f32 GELU (v5e-safe)
    net_out = jnp.dot(w2t_ref[...], h, preferred_element_type=jnp.float32)  # (C, HW)
    net_out = net_out + b2_ref[...]                                      # + (C, 1)

    # ---- EDM output preconditioning (denoiser) ----
    model_out = net_out * c_out + noised * c_skip

    # ---- squared error, partial sum for this frame tile ----
    diff = model_out - x
    sq = diff * diff
    part = jnp.sum(jnp.sum(sq, axis=1, keepdims=True), axis=0, keepdims=True)  # (1, 1)
    acc_ref[...] = acc_ref[...] + part

    # ---- finalize: weighted mean over all tokens/channels of this sample ----
    @pl.when(t == pl.num_programs(1) - 1)
    def _():
        loss_11 = acc_ref[...] * (w * inv_n_elem)                # (1, 1)
        out_ref[0] = loss_11 * jnp.ones((1, 128), jnp.float32)   # lane-dense store


def _edm_coeffs(sigma):
    s2 = sigma * sigma + SIGMA_DATA * SIGMA_DATA
    c_skip = (SIGMA_DATA * SIGMA_DATA) / s2
    c_out = sigma * SIGMA_DATA / jnp.sqrt(s2)
    c_in = 1.0 / jnp.sqrt(s2)
    c_noise = 0.25 * jnp.log(sigma)
    w = s2 / (sigma * SIGMA_DATA) ** 2
    return c_skip, c_out, c_in, c_noise, w


def diffusion_loss_pallas(x4, n4, cond_col, coefs, params):
    """x4, n4: [B, T, C, HW] (bf16); cond_col: [B, H, 1] f32; coefs: [5, B] f32."""
    B, T, C, HW = x4.shape
    H = params["w1t"].shape[0]
    inv_n_elem = 1.0 / float(T * C * HW)

    kernel = functools.partial(
        _diffusion_loss_kernel, inv_n_elem=inv_n_elem, scale_factor=SCALE_FACTOR)

    out = pl.pallas_call(
        kernel,
        out_shape=jax.ShapeDtypeStruct((B, 1, 128), jnp.float32),
        grid=(B, T),
        in_specs=[
            pl.BlockSpec(memory_space=pltpu.MemorySpace.SMEM),        # coefs (whole array)
            pl.BlockSpec((1, 1, C, HW), lambda b, t: (b, t, 0, 0)),   # z (pre-scale), bf16
            pl.BlockSpec((1, 1, C, HW), lambda b, t: (b, t, 0, 0)),   # noise, bf16
            pl.BlockSpec((1, H, 1), lambda b, t: (b, 0, 0)),          # cond emb (+b1)
            pl.BlockSpec((H, C), lambda b, t: (0, 0)),                # w1ᵀ
            pl.BlockSpec((C, H), lambda b, t: (0, 0)),                # w2ᵀ
            pl.BlockSpec((C, 1), lambda b, t: (0, 0)),                # b2
        ],
        out_specs=pl.BlockSpec((1, 1, 128), lambda b, t: (b, 0, 0)),
        scratch_shapes=[pltpu.VMEM((1, 1), jnp.float32)],
        compiler_params=pltpu.CompilerParams(
            dimension_semantics=("parallel", "arbitrary"),
            vmem_limit_bytes=64 * 1024 * 1024),
    )(coefs, x4, n4, cond_col,
      params["w1t"], params["w2t"], params["b2"])
    return out[:, 0, 0]   # per-sample loss, shape (B,)


# ----------------------------------------------------------------------------
# Engine wrapper: mirrors SATVideoDiffusionEngine.forward semantics.
# ----------------------------------------------------------------------------
def sat_engine_forward(x, cond, noise, sigma, params):
    """x, noise: [B, T, C, H, W] (b t c h w, bf16 as per get_input); cond: [B, D]; sigma: [B]."""
    B, T, C, Hs, Ws = x.shape
    HW = Hs * Ws

    # channel-major, lane-dense layout: merge (h, w) -> free contiguous reshape,
    # no transpose; scale_factor is applied inside the kernel.
    x4 = x.reshape(B, T, C, HW)
    n4 = noise.reshape(B, T, C, HW)

    c_skip, c_out, c_in, c_noise, w = _edm_coeffs(sigma)
    coefs = jnp.stack([c_skip, c_out, c_in, w, sigma], axis=0).astype(jnp.float32)

    # conditioning + timestep embedding (tiny glue matmul); fold hidden bias b1 in.
    cond_emb = cond @ params["wc"] + params["bc"] + c_noise[:, None] * params["t_vec"][None, :]
    cond_col = (cond_emb + params["b1"][None, :])[:, :, None].astype(jnp.float32)  # [B, H, 1]

    per_sample = diffusion_loss_pallas(x4, n4, cond_col, coefs, params)

    loss_dict = {"loss": jnp.mean(per_sample)}
    total_loss = sum(loss_dict.values())   # no 'total_loss' key -> sum of values
    return total_loss, loss_dict, per_sample


# ----------------------------------------------------------------------------
# Pure-JAX reference (same math, no Pallas) for validation.
# ----------------------------------------------------------------------------
def reference_forward(x, cond, noise, sigma, params):
    B, T, C, Hs, Ws = x.shape
    HW = Hs * Ws
    xf = x.astype(jnp.float32).reshape(B, T, C, HW)
    nf = noise.astype(jnp.float32).reshape(B, T, C, HW)
    z = xf * SCALE_FACTOR
    c_skip, c_out, c_in, c_noise, w = _edm_coeffs(sigma)
    noised = z + nf * sigma[:, None, None, None]
    inp = noised * c_in[:, None, None, None]
    cond_emb = cond @ params["wc"] + params["bc"] + c_noise[:, None] * params["t_vec"][None, :]
    cond_full = cond_emb + params["b1"][None, :]                               # [B, H]
    h = jnp.einsum("hc,btcn->bthn", params["w1t"], inp) + cond_full[:, None, :, None]
    h = jax.nn.gelu(h)
    out = jnp.einsum("ch,bthn->btcn", params["w2t"], h) + params["b2"][None, None, :, :]
    model_out = out * c_out[:, None, None, None] + noised * c_skip[:, None, None, None]
    per = w * jnp.mean((model_out - z) ** 2, axis=(1, 2, 3))
    return jnp.mean(per), per


# ----------------------------------------------------------------------------
def make_params(key, c_lat, hidden, cond_dim):
    ks = jax.random.split(key, 6)
    return {
        "w1t": 0.1 * jax.random.normal(ks[0], (hidden, c_lat), jnp.float32),   # (H, C)
        "b1": 0.01 * jax.random.normal(ks[1], (hidden,), jnp.float32),
        "w2t": 0.1 * jax.random.normal(ks[2], (c_lat, hidden), jnp.float32),   # (C, H)
        "b2": 0.01 * jax.random.normal(ks[3], (c_lat, 1), jnp.float32),        # (C, 1)
        "wc": 0.1 * jax.random.normal(ks[4], (cond_dim, hidden), jnp.float32),
        "bc": jnp.zeros((hidden,), jnp.float32),
        "t_vec": 0.1 * jax.random.normal(ks[5], (hidden,), jnp.float32),
    }


if __name__ == "__main__":
    B, T, C, Hs, Ws = 2, 4, 16, 16, 16     # latent video b t c h w
    HIDDEN, COND_DIM = 64, 32

    root = jax.random.PRNGKey(0)
    k_x, k_n, k_c, k_s, k_p = jax.random.split(root, 5)

    # get_input(batch): batch['mp4'].to(self.dtype) with args.bf16 -> bfloat16 stream
    x = jax.random.normal(k_x, (B, T, C, Hs, Ws), jnp.float32).astype(jnp.bfloat16)
    noise = jax.random.normal(k_n, (B, T, C, Hs, Ws), jnp.float32).astype(jnp.bfloat16)
    cond = jax.random.normal(k_c, (B, COND_DIM), jnp.float32)         # conditioner output
    sigma = jnp.exp(jax.random.normal(k_s, (B,), jnp.float32) * 0.5)  # sigma sampler
    params = make_params(k_p, C, HIDDEN, COND_DIM)

    total_loss, loss_dict, per_sample = sat_engine_forward(x, cond, noise, sigma, params)
    jax.block_until_ready(total_loss)

    ref_total, ref_per = reference_forward(x, cond, noise, sigma, params)
    assert jnp.allclose(per_sample, ref_per, rtol=5e-3, atol=1e-4), (per_sample, ref_per)
    assert jnp.allclose(total_loss, ref_total, rtol=5e-3, atol=1e-4), (total_loss, ref_total)

    # TODO(synk): sampler / first_stage VAE decode paths (sample, log_video) are
    # inference-only utilities with no defined forward-pass semantics here.
    print("KERNEL_OK")
</pallas_src>

<mosaic_0001>
module attributes {stable_mosaic.version = 11 : i64} {
  func.func @_diffusion_loss_kernel(%arg0: i32, %arg1: i32, %arg2: memref<5x2xf32, #tpu.memory_space<smem>>, %arg3: memref<1x1x16x256xbf16, #tpu.memory_space<vmem>>, %arg4: memref<1x1x16x256xbf16, #tpu.memory_space<vmem>>, %arg5: memref<1x64x1xf32, #tpu.memory_space<vmem>>, %arg6: memref<64x16xf32, #tpu.memory_space<vmem>>, %arg7: memref<16x64xf32, #tpu.memory_space<vmem>>, %arg8: memref<16x1xf32, #tpu.memory_space<vmem>>, %arg9: memref<1x1x128xf32, #tpu.memory_space<vmem>>, %arg10: memref<1x1xf32, #tpu.memory_space<vmem>>) attributes {dimension_semantics = [#tpu.dimension_semantics<parallel>, #tpu.dimension_semantics<arbitrary>], iteration_bounds = array<i64: 2, 4>, scalar_prefetch = 0 : i64, scratch_operands = 1 : i64, tpu.core_type = #tpu.core_type<tc>, window_params = [{transform_indices = @transform_0, window_bounds = array<i64: 5, 2>}, {transform_indices = @transform_1, window_bounds = array<i64: 1, 1, 16, 256>}, {transform_indices = @transform_2, window_bounds = array<i64: 1, 1, 16, 256>}, {transform_indices = @transform_3, window_bounds = array<i64: 1, 64, 1>}, {pipeline_mode = #tpu.pipeline_mode<synchronous>, transform_indices = @transform_4, window_bounds = array<i64: 64, 16>}, {pipeline_mode = #tpu.pipeline_mode<synchronous>, transform_indices = @transform_5, window_bounds = array<i64: 16, 64>}, {pipeline_mode = #tpu.pipeline_mode<synchronous>, transform_indices = @transform_6, window_bounds = array<i64: 16, 1>}, {transform_indices = @transform_7, window_bounds = array<i64: 1, 1, 128>}]} {
    %c0 = arith.constant 0 : index
    %0 = arith.index_cast %arg0 : i32 to index
    %1 = memref.load %arg2[%c0, %0] : memref<5x2xf32, #tpu.memory_space<smem>>
    %c1 = arith.constant 1 : index
    %2 = arith.index_cast %arg0 : i32 to index
    %3 = memref.load %arg2[%c1, %2] : memref<5x2xf32, #tpu.memory_space<smem>>
    %c2 = arith.constant 2 : index
    %4 = arith.index_cast %arg0 : i32 to index
    %5 = memref.load %arg2[%c2, %4] : memref<5x2xf32, #tpu.memory_space<smem>>
    %c3 = arith.constant 3 : index
    %6 = arith.index_cast %arg0 : i32 to index
    %7 = memref.load %arg2[%c3, %6] : memref<5x2xf32, #tpu.memory_space<smem>>
    %c4 = arith.constant 4 : index
    %8 = arith.index_cast %arg0 : i32 to index
    %9 = memref.load %arg2[%c4, %8] : memref<5x2xf32, #tpu.memory_space<smem>>
    %c0_i32 = arith.constant 0 : i32
    %10 = arith.cmpi eq, %arg1, %c0_i32 : i32
    %11 = arith.extui %10 : i1 to i32
    %c0_i32_0 = arith.constant 0 : i32
    %12 = arith.cmpi ne, %11, %c0_i32_0 : i32
    scf.if %12 {
      %cst_31 = arith.constant 0.000000e+00 : f32
      %67 = vector.broadcast %cst_31 : f32 to vector<1x1xf32>
      %c0_32 = arith.constant 0 : index
      %c0_33 = arith.constant 0 : index
      %68 = vector.load %arg10[%c0_32, %c0_33] : memref<1x1xf32, #tpu.memory_space<vmem>>, vector<1x1xf32>
      tpu.vector_store %arg10[%c0_32, %c0_33], %67 {strides = array<i32>} : memref<1x1xf32, #tpu.memory_space<vmem>>, vector<1x1xf32>,
    } else {
    }
    %c0_1 = arith.constant 0 : index
    %c0_2 = arith.constant 0 : index
    %c0_3 = arith.constant 0 : index
    %c0_4 = arith.constant 0 : index
    %13 = vector.load %arg3[%c0_1, %c0_2, %c0_3, %c0_4] : memref<1x1x16x256xbf16, #tpu.memory_space<vmem>>, vector<1x1x16x256xbf16>
    %14 = vector.shape_cast %13 : vector<1x1x16x256xbf16> to vector<16x256xbf16>
    %15 = arith.extf %14 : vector<16x256xbf16> to vector<16x256xf32>
    %cst = arith.constant 0.699999988 : f32
    %16 = vector.broadcast %cst : f32 to vector<16x256xf32>
    %17 = arith.mulf %15, %16 : vector<16x256xf32>
    %c0_5 = arith.constant 0 : index
    %c0_6 = arith.constant 0 : index
    %c0_7 = arith.constant 0 : index
    %c0_8 = arith.constant 0 : index
    %18 = vector.load %arg4[%c0_5, %c0_6, %c0_7, %c0_8] : memref<1x1x16x256xbf16, #tpu.memory_space<vmem>>, vector<1x1x16x256xbf16>
    %19 = vector.shape_cast %18 : vector<1x1x16x256xbf16> to vector<16x256xbf16>
    %20 = arith.extf %19 : vector<16x256xbf16> to vector<16x256xf32>
    %21 = vector.broadcast %9 : f32 to vector<16x256xf32>
    %22 = arith.mulf %20, %21 : vector<16x256xf32>
    %23 = arith.addf %17, %22 : vector<16x256xf32>
    %24 = vector.broadcast %5 : f32 to vector<16x256xf32>
    %25 = arith.mulf %23, %24 : vector<16x256xf32>
    %c0_9 = arith.constant 0 : index
    %c0_10 = arith.constant 0 : index
    %26 = vector.load %arg6[%c0_9, %c0_10] : memref<64x16xf32, #tpu.memory_space<vmem>>, vector<64x16xf32>
    %cst_11 = arith.constant dense<0.000000e+00> : vector<64x256xf32>
    %27 = tpu.matmul %26, %25, %cst_11 {dimension_numbers = #tpu.dot_dimension_numbers<[1], [0], [0], [1], [0, 0, 1, 1], [], []>} : vector<64x16xf32>, vector<16x256xf32>, vector<64x256xf32> -> vector<64x256xf32>
    %c0_12 = arith.constant 0 : index
    %c0_13 = arith.constant 0 : index
    %c0_14 = arith.constant 0 : index
    %28 = vector.load %arg5[%c0_12, %c0_13, %c0_14] : memref<1x64x1xf32, #tpu.memory_space<vmem>>, vector<1x64x1xf32>
    %29 = vector.shape_cast %28 : vector<1x64x1xf32> to vector<64x1xf32>
    %30 = vector.broadcast %29 : vector<64x1xf32> to vector<64x256xf32>
    %31 = arith.addf %27, %30 : vector<64x256xf32>
    %32 = arith.mulf %31, %31 : vector<64x256xf32>
    %33 = arith.mulf %31, %32 : vector<64x256xf32>
    %cst_15 = arith.constant 4.471500e-02 : f32
    %34 = vector.broadcast %cst_15 : f32 to vector<64x256xf32>
    %35 = arith.mulf %34, %33 : vector<64x256xf32>
    %36 = arith.addf %31, %35 : vector<64x256xf32>
    %cst_16 = arith.constant 0.797884583 : f32
    %37 = vector.broadcast %cst_16 : f32 to vector<64x256xf32>
    %38 = arith.mulf %37, %36 : vector<64x256xf32>
    %39 = math.tanh %38 : vector<64x256xf32>
    %cst_17 = arith.constant 1.000000e+00 : f32
    %40 = vector.broadcast %cst_17 : f32 to vector<64x256xf32>
    %41 = arith.addf %40, %39 : vector<64x256xf32>
    %cst_18 = arith.constant 5.000000e-01 : f32
    %42 = vector.broadcast %cst_18 : f32 to vector<64x256xf32>
    %43 = arith.mulf %42, %41 : vector<64x256xf32>
    %44 = arith.mulf %31, %43 : vector<64x256xf32>
    %c0_19 = arith.constant 0 : index
    %c0_20 = arith.constant 0 : index
    %45 = vector.load %arg7[%c0_19, %c0_20] : memref<16x64xf32, #tpu.memory_space<vmem>>, vector<16x64xf32>
    %cst_21 = arith.constant dense<0.000000e+00> : vector<16x256xf32>
    %46 = tpu.matmul %45, %44, %cst_21 {dimension_numbers = #tpu.dot_dimension_numbers<[1], [0], [0], [1], [0, 0, 1, 1], [], []>} : vector<16x64xf32>, vector<64x256xf32>, vector<16x256xf32> -> vector<16x256xf32>
    %c0_22 = arith.constant 0 : index
    %c0_23 = arith.constant 0 : index
    %47 = vector.load %arg8[%c0_22, %c0_23] : memref<16x1xf32, #tpu.memory_space<vmem>>, vector<16x1xf32>
    %48 = vector.broadcast %47 : vector<16x1xf32> to vector<16x256xf32>
    %49 = arith.addf %46, %48 : vector<16x256xf32>
    %50 = vector.broadcast %3 : f32 to vector<16x256xf32>
    %51 = arith.mulf %49, %50 : vector<16x256xf32>
    %52 = vector.broadcast %1 : f32 to vector<16x256xf32>
    %53 = arith.mulf %23, %52 : vector<16x256xf32>
    %54 = arith.addf %51, %53 : vector<16x256xf32>
    %55 = arith.subf %54, %17 : vector<16x256xf32>
    %56 = arith.mulf %55, %55 : vector<16x256xf32>
    %cst_24 = arith.constant dense<0.000000e+00> : vector<16xf32>
    %57 = vector.multi_reduction <add>, %56, %cst_24 [1] : vector<16x256xf32> to vector<16xf32>
    %58 = vector.shape_cast %57 : vector<16xf32> to vector<16x1xf32>
    %cst_25 = arith.constant dense<0.000000e+00> : vector<1xf32>
    %59 = vector.multi_reduction <add>, %58, %cst_25 [0] : vector<16x1xf32> to vector<1xf32>
    %60 = vector.shape_cast %59 : vector<1xf32> to vector<1x1xf32>
    %c0_26 = arith.constant 0 : index
    %c0_27 = arith.constant 0 : index
    %61 = vector.load %arg10[%c0_26, %c0_27] : memref<1x1xf32, #tpu.memory_space<vmem>>, vector<1x1xf32>
    %62 = arith.addf %61, %60 : vector<1x1xf32>
    %c0_28 = arith.constant 0 : index
    %c0_29 = arith.constant 0 : index
    %63 = vector.load %arg10[%c0_28, %c0_29] : memref<1x1xf32, #tpu.memory_space<vmem>>, vector<1x1xf32>
    tpu.vector_store %arg10[%c0_28, %c0_29], %62 {strides = array<i32>} : memref<1x1xf32, #tpu.memory_space<vmem>>, vector<1x1xf32>,
    %c3_i32 = arith.constant 3 : i32
    %64 = arith.cmpi eq, %arg1, %c3_i32 : i32
    %65 = arith.extui %64 : i1 to i32
    %c0_i32_30 = arith.constant 0 : i32
    %66 = arith.cmpi ne, %65, %c0_i32_30 : i32
    scf.if %66 {
      %c0_31 = arith.constant 0 : index
      %c0_32 = arith.constant 0 : index
      %67 = vector.load %arg10[%c0_31, %c0_32] : memref<1x1xf32, #tpu.memory_space<vmem>>, vector<1x1xf32>
      %cst_33 = arith.constant 6.10351563E-5 : f32
      %68 = arith.mulf %7, %cst_33 : f32
      %69 = vector.broadcast %68 : f32 to vector<1x1xf32>
      %70 = arith.mulf %67, %69 : vector<1x1xf32>
      %cst_34 = arith.constant 1.000000e+00 : f32
      %71 = vector.broadcast %cst_34 : f32 to vector<1x128xf32>
      %72 = vector.broadcast %70 : vector<1x1xf32> to vector<1x128xf32>
      %73 = arith.mulf %72, %71 : vector<1x128xf32>
      %c0_35 = arith.constant 0 : index
      %c0_36 = arith.constant 0 : index
      %c0_37 = arith.constant 0 : index
      %74 = vector.load %arg9[%c0_35, %c0_36, %c0_37] : memref<1x1x128xf32, #tpu.memory_space<vmem>>, vector<1x1x128xf32>
      %75 = vector.shape_cast %74 : vector<1x1x128xf32> to vector<1x128xf32>
      %76 = vector.shape_cast %73 : vector<1x128xf32> to vector<1x1x128xf32>
      tpu.vector_store %arg9[%c0_35, %c0_36, %c0_37], %76 {strides = array<i32>} : memref<1x1x128xf32, #tpu.memory_space<vmem>>, vector<1x1x128xf32>,
    } else {
    }
    return
  }
  func.func @transform_0(%arg0: i32, %arg1: i32) -> (i32, i32) {
    %c0_i32 = arith.constant 0 : i32
    %c0_i32_0 = arith.constant 0 : i32
    %c0_i32_1 = arith.constant 0 : i32
    return %c0_i32, %c0_i32_0 : i32, i32
  }
  func.func @transform_1(%arg0: i32, %arg1: i32) -> (i32, i32, i32, i32) {
    %c0_i32 = arith.constant 0 : i32
    %c0_i32_0 = arith.constant 0 : i32
    %c0_i32_1 = arith.constant 0 : i32
    return %arg0, %arg1, %c0_i32, %c0_i32_0 : i32, i32, i32, i32
  }
  func.func @transform_2(%arg0: i32, %arg1: i32) -> (i32, i32, i32, i32) {
    %c0_i32 = arith.constant 0 : i32
    %c0_i32_0 = arith.constant 0 : i32
    %c0_i32_1 = arith.constant 0 : i32
    return %arg0, %arg1, %c0_i32, %c0_i32_0 : i32, i32, i32, i32
  }
  func.func @transform_3(%arg0: i32, %arg1: i32) -> (i32, i32, i32) {
    %c0_i32 = arith.constant 0 : i32
    %c0_i32_0 = arith.constant 0 : i32
    %c0_i32_1 = arith.constant 0 : i32
    return %arg0, %c0_i32, %c0_i32_0 : i32, i32, i32
  }
  func.func @transform_4(%arg0: i32, %arg1: i32) -> (i32, i32) {
    %c0_i32 = arith.constant 0 : i32
    %c0_i32_0 = arith.constant 0 : i32
    %c0_i32_1 = arith.constant 0 : i32
    return %c0_i32, %c0_i32_0 : i32, i32
  }
  func.func @transform_5(%arg0: i32, %arg1: i32) -> (i32, i32) {
    %c0_i32 = arith.constant 0 : i32
    %c0_i32_0 = arith.constant 0 : i32
    %c0_i32_1 = arith.constant 0 : i32
    return %c0_i32, %c0_i32_0 : i32, i32
  }
  func.func @transform_6(%arg0: i32, %arg1: i32) -> (i32, i32) {
    %c0_i32 = arith.constant 0 : i32
    %c0_i32_0 = arith.constant 0 : i32
    %c0_i32_1 = arith.constant 0 : i32
    return %c0_i32, %c0_i32_0 : i32, i32
  }
  func.func @transform_7(%arg0: i32, %arg1: i32) -> (i32, i32, i32) {
    %c0_i32 = arith.constant 0 : i32
    %c0_i32_0 = arith.constant 0 : i32
    %c0_i32_1 = arith.constant 0 : i32
    return %arg0, %c0_i32, %c0_i32_0 : i32, i32, i32
  }
}

</mosaic_0001>

<llo_original>
// kernel: tpu_custom_call.1
$region0: #{tpu_custom_call.1}
  #allocation0 [shape = 'u32[]', space=smem, size = 0x4, offset = 0x4, fixed_abs, tag = 'smem constant byte address 0x4 - core index']
  #allocation1 [shape = 'u32[72,128]{1,0:T(1,128)}', space=vmem, size = 0x9000, scoped, tag = 'internal scratch']
  #allocation2 [shape = 'f32[1,1]{1,0:T(1,128)}', space=vmem, size = 0x200, scoped, tag = 'scratch operand']
  %s0 = inlined_call_operand.vmem [shape: f32[5,2], index: 0, kind: input, shape index: {}]
  %s1 = inlined_call_operand.vmem [shape: bf16[2,4,16,256], index: 1, kind: input, shape index: {}]
  %s2 = inlined_call_operand.hbm [shape: bf16[2,4,16,256], index: 2, kind: input, shape index: {}]
  %s3 = inlined_call_operand.vmem [shape: f32[2,64,1], index: 3, kind: input, shape index: {}]
  %s4 = inlined_call_operand.vmem [shape: f32[64,16], index: 4, kind: input, shape index: {}]
  %s5 = inlined_call_operand.vmem [shape: f32[16,64], index: 5, kind: input, shape index: {}]
  %s6 = inlined_call_operand.vmem [shape: f32[16,1], index: 6, kind: input, shape index: {}]
  %s7 = inlined_call_operand.hbm [shape: f32[2,1,128], index: 7, kind: output, shape index: {}]
  %s8 = sld [smem:[#allocation0]]
  $region77: #{tpu_custom_call.1} parent=0
    _
  %s10 = ssub.s32 1, %s8
  %s11 = scalar_select 0, %s10, %s8
  $region1: #{tpu_custom_call.1} parent=0
    #allocation3 [shape = 'u8[4096]{0}', space=smem, size = 0x1000, scoped, tag = 'input window, operand 0, single buffered']
    #allocation4 [shape = 's32[2]{0}', space=sflag, size = 0x8, scoped, tag = 'scoped memory for tpu_custom_call.1']
    #allocation5 [shape = 's32[2]{0}', space=sflag, size = 0x8, scoped, tag = 'scoped memory for tpu_custom_call.1']
    #allocation6 [shape = 's32[2]{0}', space=sflag, size = 0x8, scoped, tag = 'scoped memory for tpu_custom_call.1']
    #allocation7 [shape = 'u8[16384]{0}', space=vmem, size = 0x4000, scoped, tag = 'input window, operand 2']
    #allocation8 [shape = 'u8[1024]{0}', space=vmem, size = 0x400, scoped, tag = 'output window, operand 0']
    %12 = vsyncpa [#allocation6], 0
    %13 = vsyncpa [#allocation4], 0
    %s14 = scalar_lea.sflag [#allocation4], 1
    %15 = vsyncpa %s14, 0
    %16 = vsyncpa [#allocation5], 0
    %s17 = scalar_lea.sflag [#allocation5], 1
    %18 = vsyncpa %s17, 0
    loop: start=0, step=1, limit=10
    $region2: #{tpu_custom_call.1} parent=1 // loop_pre_header
      _
    $region3: #{tpu_custom_call.1} parent=1 // loop_header
      %s20 = sphi 0, %s24
      %p21 = scmp.ge.s32.totalorder %s20, 10
      %s27 = sphi 0, %s39
      %s28 = sphi 0, %s35
      %s29 = sphi 0, %s27
      %s30 = sphi 0, %s28
      %s31 = sphi 0, %s29
      %s32 = sphi 0, %s30
      %s40 = sphi 0, %s40
      %s42 = sphi 0, %s40
      %s43 = sphi 0, %s42
      %s57 = sphi 0, %s43
      %s65 = sphi 0, %s67
      %s68 = sphi 0, %s65
      %s69 = sphi 0, %s68
      %s85 = sphi 0, %s69
      %s93 = sphi 0, %s95
      %s96 = sphi 0, %s93
      %s97 = sphi 0, %s96
      %s113 = sphi 0, %s97
      %s119 = sphi 0, %s121
      %s122 = sphi 0, %s119
      %s123 = sphi 0, %s122
      %s139 = sphi 0, %s123
      %s143 = sphi 0, %s143
      %s145 = sphi 0, %s143
      %s146 = sphi 0, %s145
      %s160 = sphi 0, %s146
      %s164 = sphi 0, %s164
      %s166 = sphi 0, %s164
      %s167 = sphi 0, %s166
      %s181 = sphi 0, %s167
      %s185 = sphi 0, %s185
      %s187 = sphi 0, %s185
      %s188 = sphi 0, %s187
      %s202 = sphi 0, %s188
      %s208 = sphi 0, %s210
      %s211 = sphi 0, %s208
      %s212 = sphi 0, %s211
      %s228 = sphi 0, %s212
    $region4: #{tpu_custom_call.1} parent=1 // loop_header_branch
      %23 = sbr.rel (%p21) target = $region8
    $region5: #{tpu_custom_call.1} parent=1 // loop_body
      %s25 = ssub.s32 %s20, 1
      %s26 = ssub.s32 %s20, 2
      %s33 = sadd.s32 1, %s28
      %p34 = scmp.ge.s32.totalorder %s33, 4
      %s35 = scalar_select %p34, 0, %s33
      %s36 = sadd.s32 1, %s27
      %s37 = scalar_select %p34, %s36, %s27
      %p38 = scmp.ge.s32.totalorder %s37, 2
      %s39 = scalar_select %p38, 0, %s37
      %s41 = sadd.s32 %s40, 1
      %p44 = scmp.eq.s32.totalorder %s20, 7
      %p45 = scmp.ne.s32.totalorder %s40, %s42
      %p46 = scmp.eq.s32.totalorder %s20, 0
      %p47 = por %p45, %p46
      %p48 = scmp.ne.s32.totalorder %s40, %s42
      %p49 = scmp.eq.s32.totalorder %s25, 7
      %p50 = por %p48, %p49
      %p51 = scmp.ne.s32.totalorder %s42, %s43
      %p52 = scmp.eq.s32.totalorder %s25, 0
      %p53 = por %p51, %p52
      %p54 = scmp.ne.s32.totalorder %s42, %s43
      %p55 = scmp.eq.s32.totalorder %s26, 7
      %p56 = por %p54, %p55
      %p58 = scmp.ne.s32.totalorder %s43, %s57
      %p59 = scmp.eq.s32.totalorder %s26, 0
      %p60 = por %p58, %p59
      %s61 = ssub.s32 %s27, %s39
      %s62 = ssub.s32 %s28, %s35
      %s63 = sor.u32 %s61, %s62
      %p64 = scmp.eq.s32.totalorder %s63, 0
      %s66 = sadd.s32 %s65, 1
      %s67 = scalar_select %p64, %s65, %s66
      %p70 = pneg %p64
      %p71 = scmp.eq.s32.totalorder %s20, 7
      %p72 = por %p70, %p71
      %p73 = scmp.ne.s32.totalorder %s65, %s68
      %p74 = scmp.eq.s32.totalorder %s20, 0
      %p75 = por %p73, %p74
      %p76 = scmp.ne.s32.totalorder %s65, %s68
      %p77 = scmp.eq.s32.totalorder %s25, 7
      %p78 = por %p76, %p77
      %p79 = scmp.ne.s32.totalorder %s68, %s69
      %p80 = scmp.eq.s32.totalorder %s25, 0
      %p81 = por %p79, %p80
      %p82 = scmp.ne.s32.totalorder %s68, %s69
      %p83 = scmp.eq.s32.totalorder %s26, 7
      %p84 = por %p82, %p83
      %p86 = scmp.ne.s32.totalorder %s69, %s85
      %p87 = scmp.eq.s32.totalorder %s26, 0
      %p88 = por %p86, %p87
      %s89 = ssub.s32 %s27, %s39
      %s90 = ssub.s32 %s28, %s35
      %s91 = sor.u32 %s89, %s90
      %p92 = scmp.eq.s32.totalorder %s91, 0
      %s94 = sadd.s32 %s93, 1
      %s95 = scalar_select %p92, %s93, %s94
      %p98 = pneg %p92
      %p99 = scmp.eq.s32.totalorder %s20, 7
      %p100 = por %p98, %p99
      %p101 = scmp.ne.s32.totalorder %s93, %s96
      %p102 = scmp.eq.s32.totalorder %s20, 0
      %p103 = por %p101, %p102
      %p104 = scmp.ne.s32.totalorder %s93, %s96
      %p105 = scmp.eq.s32.totalorder %s25, 7
      %p106 = por %p104, %p105
      %p107 = scmp.ne.s32.totalorder %s96, %s97
      %p108 = scmp.eq.s32.totalorder %s25, 0
      %p109 = por %p107, %p108
      %p110 = scmp.ne.s32.totalorder %s96, %s97
      %p111 = scmp.eq.s32.totalorder %s26, 7
      %p112 = por %p110, %p111
      %p114 = scmp.ne.s32.totalorder %s97, %s113
      %p115 = scmp.eq.s32.totalorder %s26, 0
      %p116 = por %p114, %p115
      %s117 = ssub.s32 %s27, %s39
      %p118 = scmp.eq.s32.totalorder %s117, 0
      %s120 = sadd.s32 %s119, 1
      %s121 = scalar_select %p118, %s119, %s120
      %p124 = pneg %p118
      %p125 = scmp.eq.s32.totalorder %s20, 7
      %p126 = por %p124, %p125
      %p127 = scmp.ne.s32.totalorder %s119, %s122
      %p128 = scmp.eq.s32.totalorder %s20, 0
      %p129 = por %p127, %p128
      %p130 = scmp.ne.s32.totalorder %s119, %s122
      %p131 = scmp.eq.s32.totalorder %s25, 7
      %p132 = por %p130, %p131
      %p133 = scmp.ne.s32.totalorder %s122, %s123
      %p134 = scmp.eq.s32.totalorder %s25, 0
      %p135 = por %p133, %p134
      %p136 = scmp.ne.s32.totalorder %s122, %s123
      %p137 = scmp.eq.s32.totalorder %s26, 7
      %p138 = por %p136, %p137
      %p140 = scmp.ne.s32.totalorder %s123, %s139
      %p141 = scmp.eq.s32.totalorder %s26, 0
      %p142 = por %p140, %p141
      %s144 = sadd.s32 %s143, 1
      %p147 = scmp.eq.s32.totalorder %s20, 7
      %p148 = scmp.ne.s32.totalorder %s143, %s145
      %p149 = scmp.eq.s32.totalorder %s20, 0
      %p150 = por %p148, %p149
      %p151 = scmp.ne.s32.totalorder %s143, %s145
      %p152 = scmp.eq.s32.totalorder %s25, 7
      %p153 = por %p151, %p152
      %p154 = scmp.ne.s32.totalorder %s145, %s146
      %p155 = scmp.eq.s32.totalorder %s25, 0
      %p156 = por %p154, %p155
      %p157 = scmp.ne.s32.totalorder %s145, %s146
      %p158 = scmp.eq.s32.totalorder %s26, 7
      %p159 = por %p157, %p158
      %p161 = scmp.ne.s32.totalorder %s146, %s160
      %p162 = scmp.eq.s32.totalorder %s26, 0
      %p163 = por %p161, %p162
      %s165 = sadd.s32 %s164, 1
      %p168 = scmp.eq.s32.totalorder %s20, 7
      %p169 = scmp.ne.s32.totalorder %s164, %s166
      %p170 = scmp.eq.s32.totalorder %s20, 0
      %p171 = por %p169, %p170
      %p172 = scmp.ne.s32.totalorder %s164, %s166
      %p173 = scmp.eq.s32.totalorder %s25, 7
      %p174 = por %p172, %p173
      %p175 = scmp.ne.s32.totalorder %s166, %s167
      %p176 = scmp.eq.s32.totalorder %s25, 0
      %p177 = por %p175, %p176
      %p178 = scmp.ne.s32.totalorder %s166, %s167
      %p179 = scmp.eq.s32.totalorder %s26, 7
      %p180 = por %p178, %p179
      %p182 = scmp.ne.s32.totalorder %s167, %s181
      %p183 = scmp.eq.s32.totalorder %s26, 0
      %p184 = por %p182, %p183
      %s186 = sadd.s32 %s185, 1
      %p189 = scmp.eq.s32.totalorder %s20, 7
      %p190 = scmp.ne.s32.totalorder %s185, %s187
      %p191 = scmp.eq.s32.totalorder %s20, 0
      %p192 = por %p190, %p191
      %p193 = scmp.ne.s32.totalorder %s185, %s187
      %p194 = scmp.eq.s32.totalorder %s25, 7
      %p195 = por %p193, %p194
      %p196 = scmp.ne.s32.totalorder %s187, %s188
      %p197 = scmp.eq.s32.totalorder %s25, 0
      %p198 = por %p196, %p197
      %p199 = scmp.ne.s32.totalorder %s187, %s188
      %p200 = scmp.eq.s32.totalorder %s26, 7
      %p201 = por %p199, %p200
      %p203 = scmp.ne.s32.totalorder %s188, %s202
      %p204 = scmp.eq.s32.totalorder %s26, 0
      %p205 = por %p203, %p204
      %s206 = ssub.s32 %s27, %s39
      %p207 = scmp.eq.s32.totalorder %s206, 0
      %s209 = sadd.s32 %s208, 1
      %s210 = scalar_select %p207, %s208, %s209
      %p213 = pneg %p207
      %p214 = scmp.eq.s32.totalorder %s20, 7
      %p215 = por %p213, %p214
      %p216 = scmp.ne.s32.totalorder %s208, %s211
      %p217 = scmp.eq.s32.totalorder %s20, 0
      %p218 = por %p216, %p217
      %p219 = scmp.ne.s32.totalorder %s208, %s211
      %p220 = scmp.eq.s32.totalorder %s25, 7
      %p221 = por %p219, %p220
      %p222 = scmp.ne.s32.totalorder %s211, %s212
      %p223 = scmp.eq.s32.totalorder %s25, 0
      %p224 = por %p222, %p223
      %p225 = scmp.ne.s32.totalorder %s211, %s212
      %p226 = scmp.eq.s32.totalorder %s26, 7
      %p227 = por %p225, %p226
      %p229 = scmp.ne.s32.totalorder %s212, %s228
      %p230 = scmp.eq.s32.totalorder %s26, 0
      %p231 = por %p229, %p230
      %p232 = scmp.le.s32.totalorder 1, %s20
      %p233 = scmp.lt.s32.totalorder %s20, 9
      %p234 = pnand %p232, %p233
      %p235 = pneg %p234
      // Predicated region
      $region9: #{tpu_custom_call.1} parent=5 // pred_check
        _
      $region10: #{tpu_custom_call.1} parent=5 // pred_check_branch
        %237 = sbr.rel (%p234) target = $region12
      $region11: #{tpu_custom_call.1} parent=5 // pred_region
        %s238 = ssub.s32 %s20, 1
        // Predicated region
        $region13: #{tpu_custom_call.1} parent=11 // pred_check
          %p239 = pneg %p53
        $region14: #{tpu_custom_call.1} parent=11 // pred_check_branch
          %241 = sbr.rel (%p239) target = $region16
        $region15: #{tpu_custom_call.1} parent=11 // pred_region
          %243 = vsyncadd [#allocation6], 0
          %s245 = sshll.u32 %s0, 4
          %s246 = int_to_ptr.vmem [resolvable:$true] %s245
          %248 = dma.vmem_to_smem %s246, 128, [#allocation3], [#allocation6]
        $region16: #{tpu_custom_call.1} parent=11 // pred_fallthru
          _
        // Predicated region
        $region17: #{tpu_custom_call.1} parent=11 // pred_check
          %p249 = pneg %p156
        $region18: #{tpu_custom_call.1} parent=11 // pred_check_branch
          %251 = sbr.rel (%p249) target = $region20
        $region19: #{tpu_custom_call.1} parent=11 // pred_region
          _
        $region20: #{tpu_custom_call.1} parent=11 // pred_fallthru
          _
        // Predicated region
        $region21: #{tpu_custom_call.1} parent=11 // pred_check
          %p252 = pneg %p177
        $region22: #{tpu_custom_call.1} parent=11 // pred_check_branch
          %254 = sbr.rel (%p252) target = $region24
        $region23: #{tpu_custom_call.1} parent=11 // pred_region
          _
        $region24: #{tpu_custom_call.1} parent=11 // pred_fallthru
          _
        // Predicated region
        $region25: #{tpu_custom_call.1} parent=11 // pred_check
          %p255 = pneg %p198
        $region26: #{tpu_custom_call.1} parent=11 // pred_check_branch
          %257 = sbr.rel (%p255) target = $region28
        $region27: #{tpu_custom_call.1} parent=11 // pred_region
          _
        $region28: #{tpu_custom_call.1} parent=11 // pred_fallthru
          _
      $region12: #{tpu_custom_call.1} parent=5 // pred_fallthru
        _
      %p258 = scmp.lt.s32.totalorder %s20, 8
      // Predicated region
      $region29: #{tpu_custom_call.1} parent=5 // pred_check
        %p259 = pneg %p258
      $region30: #{tpu_custom_call.1} parent=5 // pred_check_branch
        %261 = sbr.rel (%p259) target = $region32
      $region31: #{tpu_custom_call.1} parent=5 // pred_region
        // Predicated region
        $region33: #{tpu_custom_call.1} parent=31 // pred_check
          %p262 = pneg %p75
        $region34: #{tpu_custom_call.1} parent=31 // pred_check_branch
          %264 = sbr.rel (%p262) target = $region36
        $region35: #{tpu_custom_call.1} parent=31 // pred_region
          %p265 = scmp.lt.s32.totalorder %s27, 1
          %s266 = scalar_select %p265, %s27, 1
          %p267 = scmp.lt.s32.totalorder %s28, 3
          %s268 = scalar_select %p267, %s28, 3
          %s269 = smul.addr %s268, 4
          %s270 = smul.addr %s266, 16
          %s271 = sadd.s32 %s269, %s270
          %s272 = smul.addr %s271, 4
          %s273 = scalar_lea.vmem %s1, %s272
        $region36: #{tpu_custom_call.1} parent=31 // pred_fallthru
          _
        // Predicated region
        $region37: #{tpu_custom_call.1} parent=31 // pred_check
          %p274 = pneg %p103
        $region38: #{tpu_custom_call.1} parent=31 // pred_check_branch
          %276 = sbr.rel (%p274) target = $region40
        $region39: #{tpu_custom_call.1} parent=31 // pred_region
          %s277 = sand.u32 %s93, 1
          %s278 = scalar_lea.sflag [#allocation4], %s277
          %s279 = sand.u32 %s93, 1
          %s280 = smul.addr %s279, 16
          %s281 = scalar_lea.vmem [#allocation7], %s280
          %283 = vsyncadd %s278, 0
          %s284 = smul.addr %s28, 4
          %s285 = smul.addr %s27, 16
          %s286 = sadd.s32 %s284, %s285
          %s287 = smul.addr %s286, 4
          %s288 = scalar_lea.hbm %s2, %s287
          %s289 = sshll.u32 %s288, 4
          %s290 = int_to_ptr.hbm [resolvable:$true] %s289
          %s291 = sshll.u32 %s281, 4
          %s292 = int_to_ptr.vmem [resolvable:$true] %s291
          %297 = dma.hbm_to_vmem [thread:$0]  %s290, 256, %s292, %s278, 128, 128, 8
        $region40: #{tpu_custom_call.1} parent=31 // pred_fallthru
          _
        // Predicated region
        $region41: #{tpu_custom_call.1} parent=31 // pred_check
          %p298 = pneg %p129
        $region42: #{tpu_custom_call.1} parent=31 // pred_check_branch
          %300 = sbr.rel (%p298) target = $region44
        $region43: #{tpu_custom_call.1} parent=31 // pred_region
          %p301 = scmp.lt.s32.totalorder %s27, 1
          %s302 = scalar_select %p301, %s27, 1
          %s303 = smul.addr %s302, 8
          %s304 = smul.addr %s303, 8
          %s305 = scalar_lea.vmem %s3, %s304
        $region44: #{tpu_custom_call.1} parent=31 // pred_fallthru
          _
      $region32: #{tpu_custom_call.1} parent=5 // pred_fallthru
        _
      %p306 = scmp.le.s32.totalorder 1, %s20
      %p307 = scmp.lt.s32.totalorder %s20, 9
      %p308 = pnand %p306, %p307
      %p309 = pneg %p308
      // Predicated region
      $region45: #{tpu_custom_call.1} parent=5 // pred_check
        _
      $region46: #{tpu_custom_call.1} parent=5 // pred_check_branch
        %311 = sbr.rel (%p308) target = $region48
      $region47: #{tpu_custom_call.1} parent=5 // pred_region
        %s312 = ssub.s32 %s20, 1
        // Predicated region
        $region49: #{tpu_custom_call.1} parent=47 // pred_check
          %p313 = pneg %p53
        $region50: #{tpu_custom_call.1} parent=47 // pred_check_branch
          %315 = sbr.rel (%p313) target = $region52
        $region51: #{tpu_custom_call.1} parent=47 // pred_region
          %317 = dma.done [#allocation6], 128
        $region52: #{tpu_custom_call.1} parent=47 // pred_fallthru
          _
        %s318 = sand.u32 %s96, 1
        %s319 = scalar_lea.sflag [#allocation4], %s318
        %s320 = sand.u32 %s96, 1
        %s321 = smul.addr %s320, 16
        %s322 = scalar_lea.vmem [#allocation7], %s321
        // Predicated region
        $region53: #{tpu_custom_call.1} parent=47 // pred_check
          %p323 = pneg %p109
        $region54: #{tpu_custom_call.1} parent=47 // pred_check_branch
          %325 = sbr.rel (%p323) target = $region56
        $region55: #{tpu_custom_call.1} parent=47 // pred_region
          %327 = dma.done %s319, 256
        $region56: #{tpu_custom_call.1} parent=47 // pred_fallthru
          _
        %328 = sfence
        %p329 = pneg %p53
        %p330 = pneg %p50
        %p331 = scmp.lt.s32.totalorder %s29, 1
        %s332 = scalar_select %p331, %s29, 1
        %p333 = scmp.lt.s32.totalorder %s30, 3
        %s334 = scalar_select %p333, %s30, 3
        %s335 = smul.addr %s334, 4
        %s336 = smul.addr %s332, 16
        %s337 = sadd.s32 %s335, %s336
        %s338 = smul.addr %s337, 4
        %s339 = scalar_lea.vmem %s1, %s338
        %p340 = pneg %p81
        %p341 = pneg %p78
        %s342 = sand.u32 %s96, 1
        %s343 = scalar_lea.sflag [#allocation4], %s342
        %s344 = sand.u32 %s96, 1
        %s345 = smul.addr %s344, 16
        %s346 = scalar_lea.vmem [#allocation7], %s345
        %p347 = pneg %p109
        %p348 = pneg %p106
        %p349 = scmp.lt.s32.totalorder %s29, 1
        %s350 = scalar_select %p349, %s29, 1
        %s351 = smul.addr %s350, 8
        %s352 = smul.addr %s351, 8
        %s353 = scalar_lea.vmem %s3, %s352
        %p354 = pneg %p135
        %p355 = pneg %p132
        %p356 = pneg %p156
        %p357 = pneg %p153
        %p358 = pneg %p177
        %p359 = pneg %p174
        %p360 = pneg %p198
        %p361 = pneg %p195
        %p362 = pneg %p224
        %p363 = pneg %p221
        %s364 = sand.u32 %s211, 1
        %s365 = scalar_lea.sflag [#allocation5], %s364
        %s366 = sand.u32 %s211, 1
        %s367 = scalar_lea.vmem [#allocation8], %s366
        %p368 = scmp.lt.s32.totalorder %s29, 1
        %s369 = scalar_select %p368, %s29, 1
        %p370 = scmp.lt.s32.totalorder %s30, 3
        %s371 = scalar_select %p370, %s30, 3
        %s372 = smul.addr %s371, 4
        %s373 = smul.addr %s369, 16
        %s374 = sadd.s32 %s372, %s373
        %s375 = smul.addr %s374, 4
        %s376 = scalar_lea.vmem %s1, %s375
        %p377 = scmp.lt.s32.totalorder %s29, 1
        %s378 = scalar_select %p377, %s29, 1
        %s379 = smul.addr %s378, 8
        %s380 = smul.addr %s379, 8
        %s381 = scalar_lea.vmem %s3, %s380
        %s382 = sld [smem:[#allocation3 + %s29]]
        %s383 = sshra.s32 %s29, 7
        %s384 = sand.u32 %s29, 127
        %s385 = sadd.s32 %s383, 1
        %s386 = smul.u32 %s385, 128
        %s387 = sshra.s32 %s29, 7
        %s388 = sand.u32 %s29, 127
        %s389 = sadd.s32 %s386, %s388
        %s390 = sld [smem:[#allocation3 + %s389]]
        %s391 = sadd.s32 %s383, 2
        %s392 = smul.u32 %s391, 128
        %s393 = sadd.s32 %s392, %s388
        %s394 = sld [smem:[#allocation3 + %s393]]
        %s395 = sadd.s32 %s383, 3
        %s396 = smul.u32 %s395, 128
        %s397 = sadd.s32 %s396, %s388
        %s398 = sld [smem:[#allocation3 + %s397]]
        %s399 = sadd.s32 %s383, 4
        %s400 = smul.u32 %s399, 128
        %s401 = sadd.s32 %s400, %s388
        %s402 = sld [smem:[#allocation3 + %s401]]
        %p403 = scmp.eq.s32.totalorder %s30, 0
        // Predicated region
        $region57: #{tpu_custom_call.1} parent=47 // pred_check
          %p404 = pneg %p403
        $region58: #{tpu_custom_call.1} parent=47 // pred_check_branch
          %406 = sbr.rel (%p404) target = $region60
        $region59: #{tpu_custom_call.1} parent=47 // pred_region
          %vm407 = vcmask 0
          %408 = vst.msk [vmem:[#allocation2] sm:$0x1] %vm407, 0.0
        $region60: #{tpu_custom_call.1} parent=47 // pred_fallthru
          _
        %v409 = vld [vmem:[%s376] sm:$0xff]
        %v410 = vld [vmem:[%s376 + $0x8] sm:$0xff]
        %v411 = vunpack.c.l.bf16 %v409
        %v412 = vunpack.c.h.bf16 %v409
        %v413 = vunpack.c.l.bf16 %v410
        %v414 = vunpack.c.h.bf16 %v410
        %v415 = vmul.f32 %v411, 0.7
        %v416 = vmul.f32 %v412, 0.7
        %v417 = vmul.f32 %v413, 0.7
        %v418 = vmul.f32 %v414, 0.7
        %v419 = vld [vmem:[%s322] sm:$0xff]
        %v420 = vld [vmem:[%s322 + $0x8] sm:$0xff]
        %v421 = vunpack.c.l.bf16 %v419
        %v422 = vunpack.c.h.bf16 %v419
        %v423 = vunpack.c.l.bf16 %v420
        %v424 = vunpack.c.h.bf16 %v420
        %v425 = vstv %s402
        %v426 = vmul.f32 %v421, %v425
        %v427 = vmul.f32 %v422, %v425
        %v428 = vmul.f32 %v423, %v425
        %v429 = vmul.f32 %v424, %v425
        %v430 = vadd.f32 %v415, %v426
        %v431 = vadd.f32 %v416, %v427
        %v432 = vadd.f32 %v417, %v428
        %v433 = vadd.f32 %v418, %v429
        %v434 = vstv %s394
        %v435 = vmul.f32 %v430, %v434
        %v436 = vmul.f32 %v431, %v434
        %v437 = vmul.f32 %v432, %v434
        %v438 = vmul.f32 %v433, %v434
        %v439 = vld [vmem:[%s4] sm:$0xff]
        %v440 = vld [vmem:[%s4 + $0x8] sm:$0xff]
        %v441 = vld [vmem:[%s4 + $0x10] sm:$0xff]
        %v442 = vld [vmem:[%s4 + $0x18] sm:$0xff]
        %v443 = vld [vmem:[%s4 + $0x20] sm:$0xff]
        %v444 = vld [vmem:[%s4 + $0x28] sm:$0xff]
        %v445 = vld [vmem:[%s4 + $0x30] sm:$0xff]
        %v446 = vld [vmem:[%s4 + $0x38] sm:$0xff]
        %v447 = vld [vmem:[%s381] sm:$0xff]
        %v448 = vld [vmem:[%s381 + $0x8] sm:$0xff]
        %v449 = vld [vmem:[%s381 + $0x10] sm:$0xff]
        %v450 = vld [vmem:[%s381 + $0x18] sm:$0xff]
        %v451 = vld [vmem:[%s381 + $0x20] sm:$0xff]
        %v452 = vld [vmem:[%s381 + $0x28] sm:$0xff]
        %v453 = vld [vmem:[%s381 + $0x30] sm:$0xff]
        %v454 = vld [vmem:[%s381 + $0x38] sm:$0xff]
        %456 = vset.pattern.permute.xlu0 0
        %457 = vperm.xlu0 %456, %v447
        %v458 = vpop.permute.xlu0 %457
        %461 = vset.pattern.permute.xlu0 0
        %462 = vperm.xlu0 %461, %v448
        %v463 = vpop.permute.xlu0 %462
        %466 = vset.pattern.permute.xlu0 0
        %467 = vperm.xlu0 %466, %v449
        %v468 = vpop.permute.xlu0 %467
        %471 = vset.pattern.permute.xlu0 0
        %472 = vperm.xlu0 %471, %v450
        %v473 = vpop.permute.xlu0 %472
        %476 = vset.pattern.permute.xlu0 0
        %477 = vperm.xlu0 %476, %v451
        %v478 = vpop.permute.xlu0 %477
        %481 = vset.pattern.permute.xlu0 0
        %482 = vperm.xlu0 %481, %v452
        %v483 = vpop.permute.xlu0 %482
        %486 = vset.pattern.permute.xlu0 0
        %487 = vperm.xlu0 %486, %v453
        %v488 = vpop.permute.xlu0 %487
        %491 = vset.pattern.permute.xlu0 0
        %492 = vperm.xlu0 %491, %v454
        %v493 = vpop.permute.xlu0 %492
        %vm495 = vcmask 130048
        %v497 = vsel %vm495, %v439, 0
        %v500 = vsel %vm495, %v440, 0
        %v503 = vsel %vm495, %v441, 0
        %v506 = vsel %vm495, %v442, 0
        %v509 = vsel %vm495, %v443, 0
        %v512 = vsel %vm495, %v444, 0
        %v515 = vsel %vm495, %v445, 0
        %v518 = vsel %vm495, %v446, 0
        %520 = vmatpush.msra.mxu0 0.0
        %521 = vmatpush.msra.mxu0 0.0
        %522 = vmatpush.msra.mxu0 0.0
        %523 = vmatpush.msra.mxu0 0.0
        %524 = vmatpush.msra.mxu0 0.0
        %525 = vmatpush.msra.mxu0 0.0
        %526 = vmatpush.msra.mxu0 0.0
        %527 = vmatpush.msra.mxu0 0.0
        %528 = vmatpush.msra.mxu0 0.0
        %529 = vmatpush.msra.mxu0 0.0
        %530 = vmatpush.msra.mxu0 0.0
        %531 = vmatpush.msra.mxu0 0.0
        %532 = vmatpush.msra.mxu0 0.0
        %533 = vmatpush.msra.mxu0 0.0
        %534 = vmatpush.msra.mxu0 %v437
        %535 = vmatpush.msra.mxu0 %v435
        %536 = vmatmul.f32.gmra.mxu0 %v497
        %v537 = vpop.f32.mrf.mxu0
        %v538 = vadd.f32 %v458, %v537
        %539 = vmatmul.f32.gmra.mxu0 %v500
        %v540 = vpop.f32.mrf.mxu0
        %v541 = vadd.f32 %v463, %v540
        %542 = vmatmul.f32.gmra.mxu0 %v503
        %v543 = vpop.f32.mrf.mxu0
        %v544 = vadd.f32 %v468, %v543
        %545 = vmatmul.f32.gmra.mxu0 %v506
        %v546 = vpop.f32.mrf.mxu0
        %v547 = vadd.f32 %v473, %v546
        %548 = vmatmul.f32.gmra.mxu0 %v509
        %v549 = vpop.f32.mrf.mxu0
        %v550 = vadd.f32 %v478, %v549
        %551 = vmatmul.f32.gmra.mxu0 %v512
        %v552 = vpop.f32.mrf.mxu0
        %v553 = vadd.f32 %v483, %v552
        %554 = vmatmul.f32.gmra.mxu0 %v515
        %v555 = vpop.f32.mrf.mxu0
        %v556 = vadd.f32 %v488, %v555
        %557 = vmatmul.f32.gmra.mxu0 %v518
        %v558 = vpop.f32.mrf.mxu0
        %v559 = vadd.f32 %v493, %v558
        %560 = vdwg.mxu0
        %561 = vmatpush.msra.mxu0 0.0
        %562 = vmatpush.msra.mxu0 0.0
        %563 = vmatpush.msra.mxu0 0.0
        %564 = vmatpush.msra.mxu0 0.0
        %565 = vmatpush.msra.mxu0 0.0
        %566 = vmatpush.msra.mxu0 0.0
        %567 = vmatpush.msra.mxu0 0.0
        %568 = vmatpush.msra.mxu0 0.0
        %569 = vmatpush.msra.mxu0 0.0
        %570 = vmatpush.msra.mxu0 0.0
        %571 = vmatpush.msra.mxu0 0.0
        %572 = vmatpush.msra.mxu0 0.0
        %573 = vmatpush.msra.mxu0 0.0
        %574 = vmatpush.msra.mxu0 0.0
        %575 = vmatpush.msra.mxu0 %v438
        %576 = vmatpush.msra.mxu0 %v436
        %577 = vmatmul.f32.gmra.mxu0 %v497
        %v578 = vpop.f32.mrf.mxu0
        %v579 = vadd.f32 %v458, %v578
        %580 = vmatmul.f32.gmra.mxu0 %v500
        %v581 = vpop.f32.mrf.mxu0
        %v582 = vadd.f32 %v463, %v581
        %583 = vmatmul.f32.gmra.mxu0 %v503
        %v584 = vpop.f32.mrf.mxu0
        %v585 = vadd.f32 %v468, %v584
        %586 = vmatmul.f32.gmra.mxu0 %v506
        %v587 = vpop.f32.mrf.mxu0
        %v588 = vadd.f32 %v473, %v587
        %589 = vmatmul.f32.gmra.mxu0 %v509
        %v590 = vpop.f32.mrf.mxu0
        %v591 = vadd.f32 %v478, %v590
        %592 = vmatmul.f32.gmra.mxu0 %v512
        %v593 = vpop.f32.mrf.mxu0
        %v594 = vadd.f32 %v483, %v593
        %595 = vmatmul.f32.gmra.mxu0 %v515
        %v596 = vpop.f32.mrf.mxu0
        %v597 = vadd.f32 %v488, %v596
        %598 = vmatmul.f32.gmra.mxu0 %v518
        %v599 = vpop.f32.mrf.mxu0
        %v600 = vadd.f32 %v493, %v599
        %601 = vdwg.mxu0
        %v602 = vmul.f32 %v538, %v538
        %v603 = vmul.f32 %v579, %v579
        %v604 = vmul.f32 %v541, %v541
        %v605 = vmul.f32 %v582, %v582
        %v606 = vmul.f32 %v544, %v544
        %v607 = vmul.f32 %v585, %v585
        %v608 = vmul.f32 %v547, %v547
        %v609 = vmul.f32 %v588, %v588
        %v610 = vmul.f32 %v550, %v550
        %v611 = vmul.f32 %v591, %v591
        %v612 = vmul.f32 %v553, %v553
        %v613 = vmul.f32 %v594, %v594
        %v614 = vmul.f32 %v556, %v556
        %v615 = vmul.f32 %v597, %v597
        %v616 = vmul.f32 %v559, %v559
        %v617 = vmul.f32 %v600, %v600
        %v618 = vmul.f32 %v538, %v602
        %v619 = vmul.f32 %v579, %v603
        %v620 = vmul.f32 %v541, %v604
        %v621 = vmul.f32 %v582, %v605
        %v622 = vmul.f32 %v544, %v606
        %v623 = vmul.f32 %v585, %v607
        %v624 = vmul.f32 %v547, %v608
        %v625 = vmul.f32 %v588, %v609
        %v626 = vmul.f32 %v550, %v610
        %v627 = vmul.f32 %v591, %v611
        %v628 = vmul.f32 %v553, %v612
        %v629 = vmul.f32 %v594, %v613
        %v630 = vmul.f32 %v556, %v614
        %v631 = vmul.f32 %v597, %v615
        %v632 = vmul.f32 %v559, %v616
        %v633 = vmul.f32 %v600, %v617
        %v634 = vmul.f32 %v618, 0.044715
        %v635 = vmul.f32 %v619, 0.044715
        %v636 = vmul.f32 %v620, 0.044715
        %v637 = vmul.f32 %v621, 0.044715
        %v638 = vmul.f32 %v622, 0.044715
        %v639 = vmul.f32 %v623, 0.044715
        %v640 = vmul.f32 %v624, 0.044715
        %v641 = vmul.f32 %v625, 0.044715
        %v642 = vmul.f32 %v626, 0.044715
        %v643 = vmul.f32 %v627, 0.044715
        %v644 = vmul.f32 %v628, 0.044715
        %v645 = vmul.f32 %v629, 0.044715
        %v646 = vmul.f32 %v630, 0.044715
        %v647 = vmul.f32 %v631, 0.044715
        %v648 = vmul.f32 %v632, 0.044715
        %v649 = vmul.f32 %v633, 0.044715
        %v650 = vadd.f32 %v538, %v634
        %v651 = vadd.f32 %v579, %v635
        %v652 = vadd.f32 %v541, %v636
        %v653 = vadd.f32 %v582, %v637
        %v654 = vadd.f32 %v544, %v638
        %v655 = vadd.f32 %v585, %v639
        %v656 = vadd.f32 %v547, %v640
        %v657 = vadd.f32 %v588, %v641
        %v658 = vadd.f32 %v550, %v642
        %v659 = vadd.f32 %v591, %v643
        %v660 = vadd.f32 %v553, %v644
        %v661 = vadd.f32 %v594, %v645
        %v662 = vadd.f32 %v556, %v646
        %v663 = vadd.f32 %v597, %v647
        %v664 = vadd.f32 %v559, %v648
        %v665 = vadd.f32 %v600, %v649
        %v666 = vmul.f32 %v650, 0.7978846
        %v667 = vmul.f32 %v651, 0.7978846
        %v668 = vmul.f32 %v652, 0.7978846
        %v669 = vmul.f32 %v653, 0.7978846
        %v670 = vmul.f32 %v654, 0.7978846
        %v671 = vmul.f32 %v655, 0.7978846
        %v672 = vmul.f32 %v656, 0.7978846
        %v673 = vmul.f32 %v657, 0.7978846
        %v674 = vmul.f32 %v658, 0.7978846
        %v675 = vmul.f32 %v659, 0.7978846
        %v676 = vmul.f32 %v660, 0.7978846
        %v677 = vmul.f32 %v661, 0.7978846
        %v678 = vmul.f32 %v662, 0.7978846
        %v679 = vmul.f32 %v663, 0.7978846
        %v680 = vmul.f32 %v664, 0.7978846
        %v681 = vmul.f32 %v665, 0.7978846
        %v682 = vtanh.pop %v666
        %v683 = vtanh.pop %v667
        %v684 = vtanh.pop %v668
        %v685 = vtanh.pop %v669
        %v686 = vtanh.pop %v670
        %v687 = vtanh.pop %v671
        %v688 = vtanh.pop %v672
        %v689 = vtanh.pop %v673
        %v690 = vtanh.pop %v674
        %v691 = vtanh.pop %v675
        %v692 = vtanh.pop %v676
        %v693 = vtanh.pop %v677
        %v694 = vtanh.pop %v678
        %v695 = vtanh.pop %v679
        %v696 = vtanh.pop %v680
        %v697 = vtanh.pop %v681
        %v698 = vadd.f32 %v682, 1.0
        %v699 = vadd.f32 %v683, 1.0
        %v700 = vadd.f32 %v684, 1.0
        %v701 = vadd.f32 %v685, 1.0
        %v702 = vadd.f32 %v686, 1.0
        %v703 = vadd.f32 %v687, 1.0
        %v704 = vadd.f32 %v688, 1.0
        %v705 = vadd.f32 %v689, 1.0
        %v706 = vadd.f32 %v690, 1.0
        %v707 = vadd.f32 %v691, 1.0
        %v708 = vadd.f32 %v692, 1.0
        %v709 = vadd.f32 %v693, 1.0
        %v710 = vadd.f32 %v694, 1.0
        %v711 = vadd.f32 %v695, 1.0
        %v712 = vadd.f32 %v696, 1.0
        %v713 = vadd.f32 %v697, 1.0
        %v714 = vmul.f32 %v698, 0.5
        %v715 = vmul.f32 %v699, 0.5
        %v716 = vmul.f32 %v700, 0.5
        %v717 = vmul.f32 %v701, 0.5
        %v718 = vmul.f32 %v702, 0.5
        %v719 = vmul.f32 %v703, 0.5
        %v720 = vmul.f32 %v704, 0.5
        %v721 = vmul.f32 %v705, 0.5
        %v722 = vmul.f32 %v706, 0.5
        %v723 = vmul.f32 %v707, 0.5
        %v724 = vmul.f32 %v708, 0.5
        %v725 = vmul.f32 %v709, 0.5
        %v726 = vmul.f32 %v710, 0.5
        %v727 = vmul.f32 %v711, 0.5
        %v728 = vmul.f32 %v712, 0.5
        %v729 = vmul.f32 %v713, 0.5
        %v730 = vmul.f32 %v538, %v714
        %v731 = vmul.f32 %v579, %v715
        %v732 = vmul.f32 %v541, %v716
        %v733 = vmul.f32 %v582, %v717
        %v734 = vmul.f32 %v544, %v718
        %v735 = vmul.f32 %v585, %v719
        %v736 = vmul.f32 %v547, %v720
        %v737 = vmul.f32 %v588, %v721
        %v738 = vmul.f32 %v550, %v722
        %v739 = vmul.f32 %v591, %v723
        %v740 = vmul.f32 %v553, %v724
        %v741 = vmul.f32 %v594, %v725
        %v742 = vmul.f32 %v556, %v726
        %v743 = vmul.f32 %v597, %v727
        %v744 = vmul.f32 %v559, %v728
        %v745 = vmul.f32 %v600, %v729
        %v746 = vld [vmem:[%s5] sm:$0xff]
        %v747 = vld [vmem:[%s5 + $0x8] sm:$0xff]
        %v748 = vld [vmem:[%s6] sm:$0xff]
        %v749 = vld [vmem:[%s6 + $0x8] sm:$0xff]
        %751 = vset.pattern.permute.xlu0 0
        %752 = vperm.xlu0 %751, %v748
        %v753 = vpop.permute.xlu0 %752
        %756 = vset.pattern.permute.xlu0 0
        %757 = vperm.xlu0 %756, %v749
        %v758 = vpop.permute.xlu0 %757
        %vm760 = vcmask 523264
        %v762 = vsel %vm760, %v746, 0
        %v765 = vsel %vm760, %v747, 0
        %767 = vmatpush.msra.mxu0 0.0
        %768 = vmatpush.msra.mxu0 0.0
        %769 = vmatpush.msra.mxu0 0.0
        %770 = vmatpush.msra.mxu0 0.0
        %771 = vmatpush.msra.mxu0 0.0
        %772 = vmatpush.msra.mxu0 0.0
        %773 = vmatpush.msra.mxu0 0.0
        %774 = vmatpush.msra.mxu0 0.0
        %775 = vmatpush.msra.mxu0 %v744
        %776 = vmatpush.msra.mxu0 %v742
        %777 = vmatpush.msra.mxu0 %v740
        %778 = vmatpush.msra.mxu0 %v738
        %779 = vmatpush.msra.mxu0 %v736
        %780 = vmatpush.msra.mxu0 %v734
        %781 = vmatpush.msra.mxu0 %v732
        %782 = vmatpush.msra.mxu0 %v730
        %783 = vmatmul.f32.gmra.mxu0 %v762
        %v784 = vpop.f32.mrf.mxu0
        %v785 = vadd.f32 %v753, %v784
        %786 = vmatmul.f32.gmra.mxu0 %v765
        %v787 = vpop.f32.mrf.mxu0
        %v788 = vadd.f32 %v758, %v787
        %789 = vdwg.mxu0
        %790 = vmatpush.msra.mxu0 0.0
        %791 = vmatpush.msra.mxu0 0.0
        %792 = vmatpush.msra.mxu0 0.0
        %793 = vmatpush.msra.mxu0 0.0
        %794 = vmatpush.msra.mxu0 0.0
        %795 = vmatpush.msra.mxu0 0.0
        %796 = vmatpush.msra.mxu0 0.0
        %797 = vmatpush.msra.mxu0 0.0
        %798 = vmatpush.msra.mxu0 %v745
        %799 = vmatpush.msra.mxu0 %v743
        %800 = vmatpush.msra.mxu0 %v741
        %801 = vmatpush.msra.mxu0 %v739
        %802 = vmatpush.msra.mxu0 %v737
        %803 = vmatpush.msra.mxu0 %v735
        %804 = vmatpush.msra.mxu0 %v733
        %805 = vmatpush.msra.mxu0 %v731
        %806 = vmatmul.f32.gmra.mxu0 %v762
        %v807 = vpop.f32.mrf.mxu0
        %v808 = vadd.f32 %v753, %v807
        %809 = vmatmul.f32.gmra.mxu0 %v765
        %v810 = vpop.f32.mrf.mxu0
        %v811 = vadd.f32 %v758, %v810
        %812 = vdwg.mxu0
        %v813 = vstv %s390
        %v814 = vmul.f32 %v785, %v813
        %v815 = vmul.f32 %v808, %v813
        %v816 = vmul.f32 %v788, %v813
        %v817 = vmul.f32 %v811, %v813
        %v818 = vstv %s382
        %v819 = vmul.f32 %v430, %v818
        %v820 = vmul.f32 %v431, %v818
        %v821 = vmul.f32 %v432, %v818
        %v822 = vmul.f32 %v433, %v818
        %v823 = vadd.f32 %v814, %v819
        %v824 = vadd.f32 %v815, %v820
        %v825 = vadd.f32 %v816, %v821
        %v826 = vadd.f32 %v817, %v822
        %v827 = vsub.f32 %v823, %v415
        %v828 = vsub.f32 %v824, %v416
        %v829 = vsub.f32 %v825, %v417
        %v830 = vsub.f32 %v826, %v418
        %v831 = vmul.f32 %v827, %v827
        %v832 = vmul.f32 %v828, %v828
        %v833 = vmul.f32 %v829, %v829
        %v834 = vmul.f32 %v830, %v830
        %v835 = vadd.f32 %v831, %v832
        %836 = vadd.xlane.f32.xlu0 %v835
        %v837 = vpop.xlane.xlu0 %836
        %v838 = vadd.f32 %v833, %v834
        %839 = vadd.xlane.f32.xlu0 %v838
        %v840 = vpop.xlane.xlu0 %839
        %v841 = vadd.f32 %v837, %v840
        %v842 = vrot.slane %v841, 4
        %v843 = vadd.f32 %v841, %v842
        %v844 = vrot.slane %v843, 2
        %v845 = vadd.f32 %v843, %v844
        %v846 = vrot.slane %v845, 1
        %v847 = vadd.f32 %v845, %v846
        %v848 = vld [vmem:[#allocation2] sm:$0x1]
        %v849 = vadd.f32 %v848, %v847
        %vm850 = vcmask 0
        %851 = vst.msk [vmem:[#allocation2] sm:$0x1] %vm850, %v849
        %p852 = scmp.eq.s32.totalorder %s30, 3
        // Predicated region
        $region61: #{tpu_custom_call.1} parent=47 // pred_check
          %p853 = pneg %p852
        $region62: #{tpu_custom_call.1} parent=47 // pred_check_branch
          %855 = sbr.rel (%p853) target = $region64
        $region63: #{tpu_custom_call.1} parent=47 // pred_region
          %v856 = vld [vmem:[#allocation2] sm:$0x1]
          %s857 = smul.f32 %s398, 6.1035156e-05
          %v858 = vstv %s857
          %v859 = vmul.f32 %v856, %v858
          %861 = vset.pattern.permute.xlu0 0
          %862 = vperm.xlu0 %861, %v859
          %v863 = vpop.permute.xlu0 %862
          %v865 = vperm.slane %v863, 0
          %866 = vst [vmem:[%s367] sm:$0x1] %v865
        $region64: #{tpu_custom_call.1} parent=47 // pred_fallthru
          _
        %s867 = sand.u32 %s211, 1
        %s868 = scalar_lea.sflag [#allocation5], %s867
        %s869 = sand.u32 %s211, 1
        %s870 = scalar_lea.vmem [#allocation8], %s869
        // Predicated region
        $region65: #{tpu_custom_call.1} parent=47 // pred_check
          %p871 = pneg %p221
        $region66: #{tpu_custom_call.1} parent=47 // pred_check_branch
          %873 = sbr.rel (%p871) target = $region68
        $region67: #{tpu_custom_call.1} parent=47 // pred_region
          %875 = vsyncadd %s868, 0
          %s876 = scalar_lea.hbm %s7, %s29
          %s878 = sshll.u32 %s870, 4
          %s879 = int_to_ptr.vmem [resolvable:$true] %s878
          %s880 = sshll.u32 %s876, 4
          %s881 = int_to_ptr.hbm [resolvable:$true] %s880
          %883 = dma.vmem_to_hbm [thread:$0]  %s879, 16, %s881, %s868
        $region68: #{tpu_custom_call.1} parent=47 // pred_fallthru
          _
      $region48: #{tpu_custom_call.1} parent=5 // pred_fallthru
        _
      %p884 = scmp.le.s32.totalorder 2, %s20
      // Predicated region
      $region69: #{tpu_custom_call.1} parent=5 // pred_check
        %p885 = pneg %p884
      $region70: #{tpu_custom_call.1} parent=5 // pred_check_branch
        %887 = sbr.rel (%p885) target = $region72
      $region71: #{tpu_custom_call.1} parent=5 // pred_region
        %s888 = ssub.s32 %s20, 2
        // Predicated region
        $region73: #{tpu_custom_call.1} parent=71 // pred_check
          %p889 = pneg %p227
        $region74: #{tpu_custom_call.1} parent=71 // pred_check_branch
          %891 = sbr.rel (%p889) target = $region76
        $region75: #{tpu_custom_call.1} parent=71 // pred_region
          %s892 = sand.u32 %s212, 1
          %s893 = scalar_lea.sflag [#allocation5], %s892
          %s894 = sand.u32 %s212, 1
          %s895 = scalar_lea.vmem [#allocation8], %s894
          %897 = dma.done %s893, 16
        $region76: #{tpu_custom_call.1} parent=71 // pred_fallthru
          _
      $region72: #{tpu_custom_call.1} parent=5 // pred_fallthru
        _
    $region6: #{tpu_custom_call.1} parent=1 // loop_footer
      %s24 = sadd.s32 1, %s20
    $region7: #{tpu_custom_call.1} parent=1 // loop_footer_branch
      %19 = sbr.rel target = $region3
    $region8: #{tpu_custom_call.1} parent=1 // loop_exit
      _
    %898 = vsyncpa [#allocation4], 1
    %s899 = scalar_lea.sflag [#allocation4], 1
    %900 = vsyncpa %s899, 1
    %901 = vsyncpa [#allocation5], 1
    %s902 = scalar_lea.sflag [#allocation5], 1
    %903 = vsyncpa %s902, 1
    %904 = vsyncpa [#allocation6], 1
    %s905 = scalar_lea.sflag [#allocation6], 1
    %906 = vsyncpa %s905, 1

</llo_original>
